<compile_context>
chip_gen: v5e
topology: v5e:2x2
jax: 0.10.0
libtpu: 0.0.40
codegen_flags: <defaults>
</compile_context>

<pallas_src>
import math

import jax
import jax.numpy as jnp
from jax.experimental import pallas as pl
from jax.experimental.pallas import tpu as pltpu

NUM_ANCHORS = 3          # config.NUM_ANCHORS
NUM_CLASSES = 6          # ClassHead default
INCHANNELS = 64          # ClassHead default inchannels
LANE = 128


def class_head_kernel(x_ref, w_ref, b_ref, o_ref):
    # x_ref: (1, C, T)   activations, channels on sublanes / spatial on lanes
    # w_ref: (Ko, C)     resident 1x1-conv weight
    # b_ref: (Ko, 1)     resident bias
    # o_ref: (1, T, Ko)  channel-last output tile (spatial-major, contiguous
    #                    HBM write; reorder fused here instead of in XLA)
    x = x_ref[0]                                               # (C, T)
    y = jnp.dot(w_ref[...], x,
                preferred_element_type=jnp.float32)            # (Ko, T)
    y = y + b_ref[...]                                         # bias broadcast
    o_ref[0] = y.T.astype(o_ref.dtype)                         # (T, Ko)


def _round_up(a, m):
    return ((a + m - 1) // m) * m


def class_head(x_nchw, conv_weight, conv_bias, *,
               num_classes=NUM_CLASSES, tile_cap=8192):
    """x_nchw: (B, C, H, W); conv_weight: (Ko, C, 1, 1); conv_bias: (Ko,)
    with Ko = NUM_ANCHORS * num_classes.  Returns (B, H*W*A, num_classes)."""
    B, C, H, W = x_nchw.shape
    Ko = conv_weight.shape[0]
    A = Ko // num_classes
    HW = H * W

    # Free reshapes: keep the native NCHW layout.
    x3d = x_nchw.reshape(B, C, HW)
    w2d = conv_weight.reshape(Ko, C)
    b2d = conv_bias.reshape(Ko, 1)

    assert tile_cap % LANE == 0
    hw_aligned = _round_up(HW, LANE)

    # Balanced spatial tiling: split hw_aligned into near-equal 128-multiple
    # tiles instead of capping at tile_cap and padding the remainder.
    n_tiles = pl.cdiv(hw_aligned, tile_cap)
    if B < 2:
        # v7x has 2 TensorCores; with B==1 make sure the spatial grid axis has
        # at least 2 parallel blocks so both cores get work.
        n_tiles = max(n_tiles, min(2, hw_aligned // LANE))
    T = _round_up(pl.cdiv(hw_aligned, n_tiles), LANE)
    HWp = n_tiles * T

    if HWp != HW:
        # Only hit when H*W % 128 != 0 (or tiny over-coverage from balancing):
        # pad spatial lanes with zeros; padded rows are sliced off below.
        x3d = jnp.pad(x3d, ((0, 0), (0, 0), (0, HWp - HW)))

    grid = (B, n_tiles)

    bytes_per = jnp.dtype(x_nchw.dtype).itemsize
    cost = pl.CostEstimate(
        flops=2 * B * HWp * C * Ko,
        transcendentals=0,
        bytes_accessed=bytes_per * (B * C * HWp + Ko * C + Ko + B * HWp * Ko),
    )

    out_cl = pl.pallas_call(
        class_head_kernel,
        out_shape=jax.ShapeDtypeStruct((B, HWp, Ko), x_nchw.dtype),
        grid_spec=pltpu.PrefetchScalarGridSpec(
            num_scalar_prefetch=0,
            grid=grid,
            in_specs=[
                pl.BlockSpec((1, C, T), lambda b, j: (b, 0, j)),   # activations
                pl.BlockSpec((Ko, C), lambda b, j: (0, 0)),        # weight (resident)
                pl.BlockSpec((Ko, 1), lambda b, j: (0, 0)),        # bias (resident)
            ],
            out_specs=pl.BlockSpec((1, T, Ko), lambda b, j: (b, j, 0)),
        ),
        compiler_params=pltpu.CompilerParams(
            dimension_semantics=("parallel", "parallel"),
            vmem_limit_bytes=32 * 1024 * 1024,
        ),
        cost_estimate=cost,
    )(x3d, w2d, b2d)

    # Channel-last layout already produced in-kernel: strip spatial padding
    # (no-op when H*W % 128 == 0) and do the free view
    # (B, HW, Ko) -> (B, HW*A, num_classes), matching torch's
    # permute(0, 2, 3, 1).contiguous().view(B, -1, num_classes).
    out = out_cl[:, :HW, :].reshape(B, HW * A, num_classes)
    return out


def class_head_ref(x_nchw, conv_weight, conv_bias, num_classes=NUM_CLASSES):
    """Pure-JAX reference mirroring the PyTorch forward."""
    B, C, H, W = x_nchw.shape
    Ko = conv_weight.shape[0]
    w2d = conv_weight.reshape(Ko, C)
    y = jnp.einsum('bchw,kc->bhwk', x_nchw, w2d) + conv_bias
    return y.reshape(B, -1, num_classes)


if __name__ == "__main__":
    key = jax.random.PRNGKey(0)
    kx, kw, kb = jax.random.split(key, 3)

    Ko = NUM_ANCHORS * NUM_CLASSES
    C = INCHANNELS

    # Deterministic parameter init (Conv2d(inchannels, Ko, kernel_size=1))
    fan_in = C * 1 * 1
    bound = 1.0 / math.sqrt(fan_in)
    conv_w = jax.random.uniform(kw, (Ko, C, 1, 1),
                                minval=-bound, maxval=bound, dtype=jnp.float32)
    conv_b = jax.random.uniform(kb, (Ko,),
                                minval=-bound, maxval=bound, dtype=jnp.float32)

    # Cover: lane-aligned batch>1, single-image (v7x 2-tile split), ragged HW.
    test_shapes = [(2, C, 16, 16), (1, C, 16, 16), (2, C, 10, 10)]
    for (B, Ci, H, W) in test_shapes:
        kx, sub = jax.random.split(kx)
        x = jax.random.normal(sub, (B, Ci, H, W), dtype=jnp.float32)

        out = class_head(x, conv_w, conv_b)
        out = jax.block_until_ready(out)

        ref = class_head_ref(x, conv_w, conv_b)
        assert out.shape == (B, H * W * NUM_ANCHORS, NUM_CLASSES), out.shape
        assert jnp.allclose(out, ref, atol=1e-4, rtol=1e-4), \
            f"mismatch vs reference at shape {(B, Ci, H, W)}"

    print("KERNEL_OK")
</pallas_src>

<mosaic_0001>
module attributes {stable_mosaic.version = 11 : i64} {
  func.func @class_head_kernel(%arg0: i32, %arg1: i32, %arg2: memref<1x64x256xf32, #tpu.memory_space<vmem>>, %arg3: memref<18x64xf32, #tpu.memory_space<vmem>>, %arg4: memref<18x1xf32, #tpu.memory_space<vmem>>, %arg5: memref<1x256x18xf32, #tpu.memory_space<vmem>>) attributes {dimension_semantics = [#tpu.dimension_semantics<parallel>, #tpu.dimension_semantics<parallel>], iteration_bounds = array<i64: 2, 1>, scalar_prefetch = 0 : i64, scratch_operands = 0 : i64, tpu.core_type = #tpu.core_type<tc>, window_params = [{transform_indices = @transform_0, window_bounds = array<i64: 1, 64, 256>}, {pipeline_mode = #tpu.pipeline_mode<synchronous>, transform_indices = @transform_1, window_bounds = array<i64: 18, 64>}, {pipeline_mode = #tpu.pipeline_mode<synchronous>, transform_indices = @transform_2, window_bounds = array<i64: 18, 1>}, {transform_indices = @transform_3, window_bounds = array<i64: 1, 256, 18>}]} {
    %c0 = arith.constant 0 : index
    %c0_0 = arith.constant 0 : index
    %c0_1 = arith.constant 0 : index
    %0 = vector.load %arg2[%c0, %c0_0, %c0_1] : memref<1x64x256xf32, #tpu.memory_space<vmem>>, vector<1x64x256xf32>
    %1 = vector.shape_cast %0 : vector<1x64x256xf32> to vector<64x256xf32>
    %c0_2 = arith.constant 0 : index
    %c0_3 = arith.constant 0 : index
    %2 = vector.load %arg3[%c0_2, %c0_3] : memref<18x64xf32, #tpu.memory_space<vmem>>, vector<18x64xf32>
    %cst = arith.constant dense<0.000000e+00> : vector<18x256xf32>
    %3 = tpu.matmul %2, %1, %cst {dimension_numbers = #tpu.dot_dimension_numbers<[1], [0], [0], [1], [0, 0, 1, 1], [], []>} : vector<18x64xf32>, vector<64x256xf32>, vector<18x256xf32> -> vector<18x256xf32>
    %c0_4 = arith.constant 0 : index
    %c0_5 = arith.constant 0 : index
    %4 = vector.load %arg4[%c0_4, %c0_5] : memref<18x1xf32, #tpu.memory_space<vmem>>, vector<18x1xf32>
    %5 = vector.broadcast %4 : vector<18x1xf32> to vector<18x256xf32>
    %6 = arith.addf %3, %5 : vector<18x256xf32>
    %7 = tpu.transpose %6, [1, 0] : vector<18x256xf32> -> vector<256x18xf32>
    %c0_6 = arith.constant 0 : index
    %c0_7 = arith.constant 0 : index
    %c0_8 = arith.constant 0 : index
    %8 = vector.load %arg5[%c0_6, %c0_7, %c0_8] : memref<1x256x18xf32, #tpu.memory_space<vmem>>, vector<1x256x18xf32>
    %9 = vector.shape_cast %8 : vector<1x256x18xf32> to vector<256x18xf32>
    %10 = vector.shape_cast %7 : vector<256x18xf32> to vector<1x256x18xf32>
    tpu.vector_store %arg5[%c0_6, %c0_7, %c0_8], %10 {strides = array<i32>} : memref<1x256x18xf32, #tpu.memory_space<vmem>>, vector<1x256x18xf32>,
    return
  }
  func.func @transform_0(%arg0: i32, %arg1: i32) -> (i32, i32, i32) {
    %c0_i32 = arith.constant 0 : i32
    %c0_i32_0 = arith.constant 0 : i32
    return %arg0, %c0_i32, %arg1 : i32, i32, i32
  }
  func.func @transform_1(%arg0: i32, %arg1: i32) -> (i32, i32) {
    %c0_i32 = arith.constant 0 : i32
    %c0_i32_0 = arith.constant 0 : i32
    %c0_i32_1 = arith.constant 0 : i32
    return %c0_i32, %c0_i32_0 : i32, i32
  }
  func.func @transform_2(%arg0: i32, %arg1: i32) -> (i32, i32) {
    %c0_i32 = arith.constant 0 : i32
    %c0_i32_0 = arith.constant 0 : i32
    %c0_i32_1 = arith.constant 0 : i32
    return %c0_i32, %c0_i32_0 : i32, i32
  }
  func.func @transform_3(%arg0: i32, %arg1: i32) -> (i32, i32, i32) {
    %c0_i32 = arith.constant 0 : i32
    %c0_i32_0 = arith.constant 0 : i32
    return %arg0, %arg1, %c0_i32 : i32, i32, i32
  }
}

</mosaic_0001>

<llo_original>
// kernel: tpu_custom_call.1
$region0: #{tpu_custom_call.1}
  #allocation0 [shape = 'u32[]', space=smem, size = 0x4, offset = 0x4, fixed_abs, tag = 'smem constant byte address 0x4 - core index']
  #allocation1 [shape = 'u32[72,128]{1,0:T(1,128)}', space=vmem, size = 0x9000, scoped, tag = 'internal scratch']
  %s0 = inlined_call_operand.hbm [shape: f32[2,64,256], index: 0, kind: input, shape index: {}]
  %s1 = inlined_call_operand.vmem [shape: f32[18,64], index: 1, kind: input, shape index: {}]
  %s2 = inlined_call_operand.vmem [shape: f32[18,1], index: 2, kind: input, shape index: {}]
  %s3 = inlined_call_operand.vmem [shape: f32[2,256,18], index: 3, kind: output, shape index: {}]
  %s4 = sld [smem:[#allocation0]]
  $region49: #{tpu_custom_call.1} parent=0
    _
  %s6 = ssub.s32 1, %s4
  %s7 = scalar_select 0, %s6, %s4
  $region1: #{tpu_custom_call.1} parent=0
    #allocation2 [shape = 'u8[131072]{0}', space=vmem, size = 0x20000, scoped, tag = 'input window, operand 0']
    #allocation3 [shape = 's32[2]{0}', space=sflag, size = 0x8, scoped, tag = 'scoped memory for tpu_custom_call.1']
    %8 = vsyncpa [#allocation3], 0
    %s9 = scalar_lea.sflag [#allocation3], 1
    %10 = vsyncpa %s9, 0
    loop: start=0, step=1, limit=4
    $region2: #{tpu_custom_call.1} parent=1 // loop_pre_header
      _
    $region3: #{tpu_custom_call.1} parent=1 // loop_header
      %s12 = sphi 0, %s16
      %p13 = scmp.ge.s32.totalorder %s12, 4
      %s19 = sphi 0, %s31
      %s20 = sphi 0, %s27
      %s21 = sphi 0, %s19
      %s22 = sphi 0, %s20
      %s23 = sphi 0, %s21
      %s24 = sphi 0, %s22
      %s36 = sphi 0, %s38
      %s39 = sphi 0, %s36
      %s40 = sphi 0, %s39
      %s56 = sphi 0, %s40
      %s60 = sphi 0, %s60
      %s62 = sphi 0, %s60
      %s63 = sphi 0, %s62
      %s77 = sphi 0, %s63
      %s81 = sphi 0, %s81
      %s83 = sphi 0, %s81
      %s84 = sphi 0, %s83
      %s98 = sphi 0, %s84
      %s106 = sphi 0, %s108
      %s109 = sphi 0, %s106
      %s110 = sphi 0, %s109
      %s126 = sphi 0, %s110
    $region4: #{tpu_custom_call.1} parent=1 // loop_header_branch
      %15 = sbr.rel (%p13) target = $region8
    $region5: #{tpu_custom_call.1} parent=1 // loop_body
      %s17 = ssub.s32 %s12, 1
      %s18 = ssub.s32 %s12, 2
      %s25 = sadd.s32 1, %s20
      %p26 = scmp.ge.s32.totalorder %s25, 1
      %s27 = scalar_select %p26, 0, %s25
      %s28 = sadd.s32 1, %s19
      %s29 = scalar_select %p26, %s28, %s19
      %p30 = scmp.ge.s32.totalorder %s29, 2
      %s31 = scalar_select %p30, 0, %s29
      %s32 = ssub.s32 %s19, %s31
      %s33 = ssub.s32 %s20, %s27
      %s34 = sor.u32 %s32, %s33
      %p35 = scmp.eq.s32.totalorder %s34, 0
      %s37 = sadd.s32 %s36, 1
      %s38 = scalar_select %p35, %s36, %s37
      %p41 = pneg %p35
      %p42 = scmp.eq.s32.totalorder %s12, 1
      %p43 = por %p41, %p42
      %p44 = scmp.ne.s32.totalorder %s36, %s39
      %p45 = scmp.eq.s32.totalorder %s12, 0
      %p46 = por %p44, %p45
      %p47 = scmp.ne.s32.totalorder %s36, %s39
      %p48 = scmp.eq.s32.totalorder %s17, 1
      %p49 = por %p47, %p48
      %p50 = scmp.ne.s32.totalorder %s39, %s40
      %p51 = scmp.eq.s32.totalorder %s17, 0
      %p52 = por %p50, %p51
      %p53 = scmp.ne.s32.totalorder %s39, %s40
      %p54 = scmp.eq.s32.totalorder %s18, 1
      %p55 = por %p53, %p54
      %p57 = scmp.ne.s32.totalorder %s40, %s56
      %p58 = scmp.eq.s32.totalorder %s18, 0
      %p59 = por %p57, %p58
      %s61 = sadd.s32 %s60, 1
      %p64 = scmp.eq.s32.totalorder %s12, 1
      %p65 = scmp.ne.s32.totalorder %s60, %s62
      %p66 = scmp.eq.s32.totalorder %s12, 0
      %p67 = por %p65, %p66
      %p68 = scmp.ne.s32.totalorder %s60, %s62
      %p69 = scmp.eq.s32.totalorder %s17, 1
      %p70 = por %p68, %p69
      %p71 = scmp.ne.s32.totalorder %s62, %s63
      %p72 = scmp.eq.s32.totalorder %s17, 0
      %p73 = por %p71, %p72
      %p74 = scmp.ne.s32.totalorder %s62, %s63
      %p75 = scmp.eq.s32.totalorder %s18, 1
      %p76 = por %p74, %p75
      %p78 = scmp.ne.s32.totalorder %s63, %s77
      %p79 = scmp.eq.s32.totalorder %s18, 0
      %p80 = por %p78, %p79
      %s82 = sadd.s32 %s81, 1
      %p85 = scmp.eq.s32.totalorder %s12, 1
      %p86 = scmp.ne.s32.totalorder %s81, %s83
      %p87 = scmp.eq.s32.totalorder %s12, 0
      %p88 = por %p86, %p87
      %p89 = scmp.ne.s32.totalorder %s81, %s83
      %p90 = scmp.eq.s32.totalorder %s17, 1
      %p91 = por %p89, %p90
      %p92 = scmp.ne.s32.totalorder %s83, %s84
      %p93 = scmp.eq.s32.totalorder %s17, 0
      %p94 = por %p92, %p93
      %p95 = scmp.ne.s32.totalorder %s83, %s84
      %p96 = scmp.eq.s32.totalorder %s18, 1
      %p97 = por %p95, %p96
      %p99 = scmp.ne.s32.totalorder %s84, %s98
      %p100 = scmp.eq.s32.totalorder %s18, 0
      %p101 = por %p99, %p100
      %s102 = ssub.s32 %s19, %s31
      %s103 = ssub.s32 %s20, %s27
      %s104 = sor.u32 %s102, %s103
      %p105 = scmp.eq.s32.totalorder %s104, 0
      %s107 = sadd.s32 %s106, 1
      %s108 = scalar_select %p105, %s106, %s107
      %p111 = pneg %p105
      %p112 = scmp.eq.s32.totalorder %s12, 1
      %p113 = por %p111, %p112
      %p114 = scmp.ne.s32.totalorder %s106, %s109
      %p115 = scmp.eq.s32.totalorder %s12, 0
      %p116 = por %p114, %p115
      %p117 = scmp.ne.s32.totalorder %s106, %s109
      %p118 = scmp.eq.s32.totalorder %s17, 1
      %p119 = por %p117, %p118
      %p120 = scmp.ne.s32.totalorder %s109, %s110
      %p121 = scmp.eq.s32.totalorder %s17, 0
      %p122 = por %p120, %p121
      %p123 = scmp.ne.s32.totalorder %s109, %s110
      %p124 = scmp.eq.s32.totalorder %s18, 1
      %p125 = por %p123, %p124
      %p127 = scmp.ne.s32.totalorder %s110, %s126
      %p128 = scmp.eq.s32.totalorder %s18, 0
      %p129 = por %p127, %p128
      %p130 = scmp.le.s32.totalorder 1, %s12
      %p131 = scmp.lt.s32.totalorder %s12, 3
      %p132 = pnand %p130, %p131
      %p133 = pneg %p132
      // Predicated region
      $region9: #{tpu_custom_call.1} parent=5 // pred_check
        _
      $region10: #{tpu_custom_call.1} parent=5 // pred_check_branch
        %135 = sbr.rel (%p132) target = $region12
      $region11: #{tpu_custom_call.1} parent=5 // pred_region
        %s136 = ssub.s32 %s12, 1
        // Predicated region
        $region13: #{tpu_custom_call.1} parent=11 // pred_check
          %p137 = pneg %p73
        $region14: #{tpu_custom_call.1} parent=11 // pred_check_branch
          %139 = sbr.rel (%p137) target = $region16
        $region15: #{tpu_custom_call.1} parent=11 // pred_region
          _
        $region16: #{tpu_custom_call.1} parent=11 // pred_fallthru
          _
        // Predicated region
        $region17: #{tpu_custom_call.1} parent=11 // pred_check
          %p140 = pneg %p94
        $region18: #{tpu_custom_call.1} parent=11 // pred_check_branch
          %142 = sbr.rel (%p140) target = $region20
        $region19: #{tpu_custom_call.1} parent=11 // pred_region
          _
        $region20: #{tpu_custom_call.1} parent=11 // pred_fallthru
          _
      $region12: #{tpu_custom_call.1} parent=5 // pred_fallthru
        _
      %p143 = scmp.lt.s32.totalorder %s12, 2
      // Predicated region
      $region21: #{tpu_custom_call.1} parent=5 // pred_check
        %p144 = pneg %p143
      $region22: #{tpu_custom_call.1} parent=5 // pred_check_branch
        %146 = sbr.rel (%p144) target = $region24
      $region23: #{tpu_custom_call.1} parent=5 // pred_region
        // Predicated region
        $region25: #{tpu_custom_call.1} parent=23 // pred_check
          %p147 = pneg %p46
        $region26: #{tpu_custom_call.1} parent=23 // pred_check_branch
          %149 = sbr.rel (%p147) target = $region28
        $region27: #{tpu_custom_call.1} parent=23 // pred_region
          %s150 = sand.u32 %s36, 1
          %s151 = scalar_lea.sflag [#allocation3], %s150
          %s152 = sand.u32 %s36, 1
          %s153 = smul.addr %s152, 128
          %s154 = scalar_lea.vmem [#allocation2], %s153
          %s155 = smul.u32 2, %s20
          %157 = vsyncadd %s151, 0
          %s158 = smul.addr %s19, 16
          %s159 = sadd.s32 %s155, %s158
          %s160 = smul.addr %s159, 8
          %s161 = scalar_lea.hbm %s0, %s160
          %s162 = sshll.u32 %s161, 4
          %s163 = int_to_ptr.hbm [resolvable:$true] %s162
          %s164 = sshll.u32 %s154, 4
          %s165 = int_to_ptr.vmem [resolvable:$true] %s164
          %170 = dma.hbm_to_vmem [thread:$0]  %s163, 2048, %s165, %s151, 256, 256, 16
        $region28: #{tpu_custom_call.1} parent=23 // pred_fallthru
          _
      $region24: #{tpu_custom_call.1} parent=5 // pred_fallthru
        _
      %p171 = scmp.le.s32.totalorder 1, %s12
      %p172 = scmp.lt.s32.totalorder %s12, 3
      %p173 = pnand %p171, %p172
      %p174 = pneg %p173
      // Predicated region
      $region29: #{tpu_custom_call.1} parent=5 // pred_check
        _
      $region30: #{tpu_custom_call.1} parent=5 // pred_check_branch
        %176 = sbr.rel (%p173) target = $region32
      $region31: #{tpu_custom_call.1} parent=5 // pred_region
        %s177 = ssub.s32 %s12, 1
        %s178 = sand.u32 %s39, 1
        %s179 = scalar_lea.sflag [#allocation3], %s178
        %s180 = sand.u32 %s39, 1
        %s181 = smul.addr %s180, 128
        %s182 = scalar_lea.vmem [#allocation2], %s181
        // Predicated region
        $region33: #{tpu_custom_call.1} parent=31 // pred_check
          %p183 = pneg %p52
        $region34: #{tpu_custom_call.1} parent=31 // pred_check_branch
          %185 = sbr.rel (%p183) target = $region36
        $region35: #{tpu_custom_call.1} parent=31 // pred_region
          %187 = dma.done %s179, 2048
        $region36: #{tpu_custom_call.1} parent=31 // pred_fallthru
          _
        %s188 = sand.u32 %s39, 1
        %s189 = scalar_lea.sflag [#allocation3], %s188
        %s190 = sand.u32 %s39, 1
        %s191 = smul.addr %s190, 128
        %s192 = scalar_lea.vmem [#allocation2], %s191
        %p193 = pneg %p52
        %p194 = pneg %p49
        %p195 = pneg %p73
        %p196 = pneg %p70
        %p197 = pneg %p94
        %p198 = pneg %p91
        %p199 = pneg %p122
        %p200 = pneg %p119
        %s201 = smul.u32 32, %s22
        %p202 = scmp.lt.s32.totalorder %s21, 1
        %s203 = scalar_select %p202, %s21, 1
        %p204 = scmp.lt.s32.totalorder %s201, 31
        %s205 = scalar_select %p204, %s201, 31
        %s206 = smul.addr %s203, 32
        %s207 = sadd.s32 %s205, %s206
        %s208 = smul.addr %s207, 8
        %s209 = scalar_lea.vmem %s3, %s208
        %s210 = smul.u32 2, %s22
        %s211 = smul.u32 32, %s22
        %p212 = scmp.lt.s32.totalorder %s21, 1
        %s213 = scalar_select %p212, %s21, 1
        %p214 = scmp.lt.s32.totalorder %s211, 31
        %s215 = scalar_select %p214, %s211, 31
        %s216 = smul.addr %s213, 32
        %s217 = sadd.s32 %s215, %s216
        %s218 = smul.addr %s217, 8
        %s219 = scalar_lea.vmem %s3, %s218
        %s220 = smul.u32 32, %s22
        %v221 = vld [vmem:[%s182] sm:$0xff]
        %v222 = vld [vmem:[%s182 + $0x8] sm:$0xff]
        %v223 = vld [vmem:[%s182 + $0x10] sm:$0xff]
        %v224 = vld [vmem:[%s182 + $0x18] sm:$0xff]
        %v225 = vld [vmem:[%s182 + $0x20] sm:$0xff]
        %v226 = vld [vmem:[%s182 + $0x28] sm:$0xff]
        %v227 = vld [vmem:[%s182 + $0x30] sm:$0xff]
        %v228 = vld [vmem:[%s182 + $0x38] sm:$0xff]
        %v229 = vld [vmem:[%s182 + $0x40] sm:$0xff]
        %v230 = vld [vmem:[%s182 + $0x48] sm:$0xff]
        %v231 = vld [vmem:[%s182 + $0x50] sm:$0xff]
        %v232 = vld [vmem:[%s182 + $0x58] sm:$0xff]
        %v233 = vld [vmem:[%s182 + $0x60] sm:$0xff]
        %v234 = vld [vmem:[%s182 + $0x68] sm:$0xff]
        %v235 = vld [vmem:[%s182 + $0x70] sm:$0xff]
        %v236 = vld [vmem:[%s182 + $0x78] sm:$0xff]
        %v237 = vld [vmem:[%s1] sm:$0xff]
        %v238 = vld [vmem:[%s1 + $0x8] sm:$0xff]
        %v239 = vld [vmem:[%s1 + $0x10] sm:$0x3]
        %v240 = vld [vmem:[%s2] sm:$0xff]
        %v241 = vld [vmem:[%s2 + $0x8] sm:$0xff]
        %v242 = vld [vmem:[%s2 + $0x10] sm:$0x3]
        %244 = vset.pattern.permute.xlu0 0
        %245 = vperm.xlu0 %244, %v240
        %v246 = vpop.permute.xlu0 %245
        %249 = vset.pattern.permute.xlu0 0
        %250 = vperm.xlu0 %249, %v241
        %v251 = vpop.permute.xlu0 %250
        %254 = vset.pattern.permute.xlu0 0
        %255 = vperm.xlu0 %254, %v242
        %v256 = vpop.permute.xlu0 %255
        %vm258 = vcmask 523264
        %v260 = vsel %vm258, %v237, 0
        %v263 = vsel %vm258, %v238, 0
        %v266 = vsel %vm258, %v239, 0
        %268 = vmatpush.msra.mxu0 0.0
        %269 = vmatpush.msra.mxu0 0.0
        %270 = vmatpush.msra.mxu0 0.0
        %271 = vmatpush.msra.mxu0 0.0
        %272 = vmatpush.msra.mxu0 0.0
        %273 = vmatpush.msra.mxu0 0.0
        %274 = vmatpush.msra.mxu0 0.0
        %275 = vmatpush.msra.mxu0 0.0
        %276 = vmatpush.msra.mxu0 %v235
        %277 = vmatpush.msra.mxu0 %v233
        %278 = vmatpush.msra.mxu0 %v231
        %279 = vmatpush.msra.mxu0 %v229
        %280 = vmatpush.msra.mxu0 %v227
        %281 = vmatpush.msra.mxu0 %v225
        %282 = vmatpush.msra.mxu0 %v223
        %283 = vmatpush.msra.mxu0 %v221
        %284 = vmatmul.f32.gmra.mxu0 %v260
        %v285 = vpop.f32.mrf.mxu0
        %v286 = vadd.f32 %v246, %v285
        %287 = vmatmul.f32.gmra.mxu0 %v263
        %v288 = vpop.f32.mrf.mxu0
        %v289 = vadd.f32 %v251, %v288
        %290 = vmatmul.f32.gmra.mxu0 %v266
        %v291 = vpop.f32.mrf.mxu0
        %v292 = vadd.f32 %v256, %v291
        %293 = vdwg.mxu0
        %294 = vmatpush.msra.mxu0 0.0
        %295 = vmatpush.msra.mxu0 0.0
        %296 = vmatpush.msra.mxu0 0.0
        %297 = vmatpush.msra.mxu0 0.0
        %298 = vmatpush.msra.mxu0 0.0
        %299 = vmatpush.msra.mxu0 0.0
        %300 = vmatpush.msra.mxu0 0.0
        %301 = vmatpush.msra.mxu0 0.0
        %302 = vmatpush.msra.mxu0 %v236
        %303 = vmatpush.msra.mxu0 %v234
        %304 = vmatpush.msra.mxu0 %v232
        %305 = vmatpush.msra.mxu0 %v230
        %306 = vmatpush.msra.mxu0 %v228
        %307 = vmatpush.msra.mxu0 %v226
        %308 = vmatpush.msra.mxu0 %v224
        %309 = vmatpush.msra.mxu0 %v222
        %310 = vmatmul.f32.gmra.mxu0 %v260
        %v311 = vpop.f32.mrf.mxu0
        %v312 = vadd.f32 %v246, %v311
        %313 = vmatmul.f32.gmra.mxu0 %v263
        %v314 = vpop.f32.mrf.mxu0
        %v315 = vadd.f32 %v251, %v314
        %316 = vmatmul.f32.gmra.mxu0 %v266
        %v317 = vpop.f32.mrf.mxu0
        %v318 = vadd.f32 %v256, %v317
        %319 = vdwg.mxu0
        %320 = vxpose.xlu0.b32.start [1/16] %v286, 128
        %321 = vxpose.xlu0.b32.cont [2/16] %v289, 128
        %322 = vxpose.xlu0.b32.cont [3/16] %v292, 128
        %323 = vxpose.xlu0.b32.cont [4/16] 0.0, 128
        %324 = vxpose.xlu0.b32.cont [5/16] 0.0, 128
        %325 = vxpose.xlu0.b32.cont [6/16] 0.0, 128
        %326 = vxpose.xlu0.b32.cont [7/16] 0.0, 128
        %327 = vxpose.xlu0.b32.cont [8/16] 0.0, 128
        %328 = vxpose.xlu0.b32.cont [9/16] 0.0, 128
        %329 = vxpose.xlu0.b32.cont [10/16] 0.0, 128
        %330 = vxpose.xlu0.b32.cont [11/16] 0.0, 128
        %331 = vxpose.xlu0.b32.cont [12/16] 0.0, 128
        %332 = vxpose.xlu0.b32.cont [13/16] 0.0, 128
        %333 = vxpose.xlu0.b32.cont [14/16] 0.0, 128
        %334 = vxpose.xlu0.b32.cont [15/16] 0.0, 128
        %335 = vxpose.xlu0.b32.end [16/16] 0.0, 128
        %v336 = vpop.trf.xlu0
        %v337 = vpop.trf.xlu0
        %v338 = vpop.trf.xlu0
        %v339 = vpop.trf.xlu0
        %v340 = vpop.trf.xlu0
        %v341 = vpop.trf.xlu0
        %v342 = vpop.trf.xlu0
        %v343 = vpop.trf.xlu0
        %v344 = vpop.trf.xlu0
        %v345 = vpop.trf.xlu0
        %v346 = vpop.trf.xlu0
        %v347 = vpop.trf.xlu0
        %v348 = vpop.trf.xlu0
        %v349 = vpop.trf.xlu0
        %v350 = vpop.trf.xlu0
        %v351 = vpop.trf.xlu0
        %352 = vxpose.xlu0.b32.start [1/16] %v312, 128
        %353 = vxpose.xlu0.b32.cont [2/16] %v315, 128
        %354 = vxpose.xlu0.b32.cont [3/16] %v318, 128
        %355 = vxpose.xlu0.b32.cont [4/16] 0.0, 128
        %356 = vxpose.xlu0.b32.cont [5/16] 0.0, 128
        %357 = vxpose.xlu0.b32.cont [6/16] 0.0, 128
        %358 = vxpose.xlu0.b32.cont [7/16] 0.0, 128
        %359 = vxpose.xlu0.b32.cont [8/16] 0.0, 128
        %360 = vxpose.xlu0.b32.cont [9/16] 0.0, 128
        %361 = vxpose.xlu0.b32.cont [10/16] 0.0, 128
        %362 = vxpose.xlu0.b32.cont [11/16] 0.0, 128
        %363 = vxpose.xlu0.b32.cont [12/16] 0.0, 128
        %364 = vxpose.xlu0.b32.cont [13/16] 0.0, 128
        %365 = vxpose.xlu0.b32.cont [14/16] 0.0, 128
        %366 = vxpose.xlu0.b32.cont [15/16] 0.0, 128
        %367 = vxpose.xlu0.b32.end [16/16] 0.0, 128
        %v368 = vpop.trf.xlu0
        %v369 = vpop.trf.xlu0
        %v370 = vpop.trf.xlu0
        %v371 = vpop.trf.xlu0
        %v372 = vpop.trf.xlu0
        %v373 = vpop.trf.xlu0
        %v374 = vpop.trf.xlu0
        %v375 = vpop.trf.xlu0
        %v376 = vpop.trf.xlu0
        %v377 = vpop.trf.xlu0
        %v378 = vpop.trf.xlu0
        %v379 = vpop.trf.xlu0
        %v380 = vpop.trf.xlu0
        %v381 = vpop.trf.xlu0
        %v382 = vpop.trf.xlu0
        %v383 = vpop.trf.xlu0
        %vm384 = vcmask 146432
        %385 = vst.msk [vmem:[%s219] sm:$0xff] %vm384, %v336
        %386 = vst.msk [vmem:[%s219 + $0x8] sm:$0xff] %vm384, %v337
        %387 = vst.msk [vmem:[%s219 + $0x10] sm:$0xff] %vm384, %v338
        %388 = vst.msk [vmem:[%s219 + $0x18] sm:$0xff] %vm384, %v339
        %389 = vst.msk [vmem:[%s219 + $0x20] sm:$0xff] %vm384, %v340
        %390 = vst.msk [vmem:[%s219 + $0x28] sm:$0xff] %vm384, %v341
        %391 = vst.msk [vmem:[%s219 + $0x30] sm:$0xff] %vm384, %v342
        %392 = vst.msk [vmem:[%s219 + $0x38] sm:$0xff] %vm384, %v343
        %393 = vst.msk [vmem:[%s219 + $0x40] sm:$0xff] %vm384, %v344
        %394 = vst.msk [vmem:[%s219 + $0x48] sm:$0xff] %vm384, %v345
        %395 = vst.msk [vmem:[%s219 + $0x50] sm:$0xff] %vm384, %v346
        %396 = vst.msk [vmem:[%s219 + $0x58] sm:$0xff] %vm384, %v347
        %397 = vst.msk [vmem:[%s219 + $0x60] sm:$0xff] %vm384, %v348
        %398 = vst.msk [vmem:[%s219 + $0x68] sm:$0xff] %vm384, %v349
        %399 = vst.msk [vmem:[%s219 + $0x70] sm:$0xff] %vm384, %v350
        %400 = vst.msk [vmem:[%s219 + $0x78] sm:$0xff] %vm384, %v351
        %401 = vst.msk [vmem:[%s219 + $0x80] sm:$0xff] %vm384, %v368
        %402 = vst.msk [vmem:[%s219 + $0x88] sm:$0xff] %vm384, %v369
        %403 = vst.msk [vmem:[%s219 + $0x90] sm:$0xff] %vm384, %v370
        %404 = vst.msk [vmem:[%s219 + $0x98] sm:$0xff] %vm384, %v371
        %405 = vst.msk [vmem:[%s219 + $0xa0] sm:$0xff] %vm384, %v372
        %406 = vst.msk [vmem:[%s219 + $0xa8] sm:$0xff] %vm384, %v373
        %407 = vst.msk [vmem:[%s219 + $0xb0] sm:$0xff] %vm384, %v374
        %408 = vst.msk [vmem:[%s219 + $0xb8] sm:$0xff] %vm384, %v375
        %409 = vst.msk [vmem:[%s219 + $0xc0] sm:$0xff] %vm384, %v376
        %410 = vst.msk [vmem:[%s219 + $0xc8] sm:$0xff] %vm384, %v377
        %411 = vst.msk [vmem:[%s219 + $0xd0] sm:$0xff] %vm384, %v378
        %412 = vst.msk [vmem:[%s219 + $0xd8] sm:$0xff] %vm384, %v379
        %413 = vst.msk [vmem:[%s219 + $0xe0] sm:$0xff] %vm384, %v380
        %414 = vst.msk [vmem:[%s219 + $0xe8] sm:$0xff] %vm384, %v381
        %415 = vst.msk [vmem:[%s219 + $0xf0] sm:$0xff] %vm384, %v382
        %416 = vst.msk [vmem:[%s219 + $0xf8] sm:$0xff] %vm384, %v383
        %s417 = smul.u32 32, %s22
        %p418 = scmp.lt.s32.totalorder %s21, 1
        %s419 = scalar_select %p418, %s21, 1
        %p420 = scmp.lt.s32.totalorder %s417, 31
        %s421 = scalar_select %p420, %s417, 31
        %s422 = smul.addr %s419, 32
        %s423 = sadd.s32 %s421, %s422
        %s424 = smul.addr %s423, 8
        %s425 = scalar_lea.vmem %s3, %s424
        // Predicated region
        $region37: #{tpu_custom_call.1} parent=31 // pred_check
          %p426 = pneg %p119
        $region38: #{tpu_custom_call.1} parent=31 // pred_check_branch
          %428 = sbr.rel (%p426) target = $region40
        $region39: #{tpu_custom_call.1} parent=31 // pred_region
          %s429 = smul.u32 32, %s22
        $region40: #{tpu_custom_call.1} parent=31 // pred_fallthru
          _
      $region32: #{tpu_custom_call.1} parent=5 // pred_fallthru
        _
      %p430 = scmp.le.s32.totalorder 2, %s12
      // Predicated region
      $region41: #{tpu_custom_call.1} parent=5 // pred_check
        %p431 = pneg %p430
      $region42: #{tpu_custom_call.1} parent=5 // pred_check_branch
        %433 = sbr.rel (%p431) target = $region44
      $region43: #{tpu_custom_call.1} parent=5 // pred_region
        %s434 = ssub.s32 %s12, 2
        // Predicated region
        $region45: #{tpu_custom_call.1} parent=43 // pred_check
          %p435 = pneg %p125
        $region46: #{tpu_custom_call.1} parent=43 // pred_check_branch
          %437 = sbr.rel (%p435) target = $region48
        $region47: #{tpu_custom_call.1} parent=43 // pred_region
          %s438 = smul.u32 32, %s24
          %p439 = scmp.lt.s32.totalorder %s23, 1
          %s440 = scalar_select %p439, %s23, 1
          %p441 = scmp.lt.s32.totalorder %s438, 31
          %s442 = scalar_select %p441, %s438, 31
          %s443 = smul.addr %s440, 32
          %s444 = sadd.s32 %s442, %s443
          %s445 = smul.addr %s444, 8
          %s446 = scalar_lea.vmem %s3, %s445
        $region48: #{tpu_custom_call.1} parent=43 // pred_fallthru
          _
      $region44: #{tpu_custom_call.1} parent=5 // pred_fallthru
        _
    $region6: #{tpu_custom_call.1} parent=1 // loop_footer
      %s16 = sadd.s32 1, %s12
    $region7: #{tpu_custom_call.1} parent=1 // loop_footer_branch
      %11 = sbr.rel target = $region3
    $region8: #{tpu_custom_call.1} parent=1 // loop_exit
      _
    %447 = vsyncpa [#allocation3], 1
    %s448 = scalar_lea.sflag [#allocation3], 1
    %449 = vsyncpa %s448, 1

</llo_original>
